<compile_context>
chip_gen: v6e
topology: v6e:2x2x1
jax: 0.10.0
libtpu: 0.0.40
codegen_flags: <defaults>
</compile_context>

<pallas_src>
import numpy as np

import jax
import jax.numpy as jnp
from jax.experimental import pallas as pl
from jax.experimental.pallas import tpu as pltpu


def _round_up(v: int, m: int) -> int:
    return (v + m - 1) // m * m


def _segment_predictor_kernel(x_ref, w_ref, b_ref, bf_ref, out_ref):
    # Cast the row tile to the matmul dtype in-kernel (one cheap VPU cast per
    # tile; avoids a wrapper-side pad/cast pass over all of x in HBM).
    x = x_ref[...].astype(w_ref.dtype)                                 # (tm, H)

    # Fused gate|up matmul: one long vmatmul stream, f32 accumulation.
    gu = jnp.dot(x, w_ref[...], preferred_element_type=jnp.float32) + b_ref[...]
    ip = w_ref.shape[1] // 2                                           # lane-aligned (mult of 128)
    gate = gu[:, :ip]
    up = gu[:, ip:]                                                    # wf already folded in

    inner = jax.nn.silu(gate) * up                                     # (tm, Ip), f32

    # Folded (down_proj -> out_project) head: bare XLU lane-reduce + bias.
    logits = jnp.sum(inner, axis=-1)[None, :] + bf_ref[...]            # (1, tm)
    probs = jax.nn.sigmoid(logits)

    # Lane-dense writeback: (1, 1, tm) row slab -> mostly unmasked vector stores.
    out_ref[...] = probs[None].astype(out_ref.dtype)


def encoder_segment_predictor(x, params, *, tm=None, matmul_dtype=jnp.bfloat16):
    """x: (B, S, H) -> sigmoid(out_project(MLP(x))): (B, S, 1)."""
    B, S, H = x.shape
    M = B * S
    wg, bg, wu, bu, wd, bd, wo, bo = params
    I = wg.shape[1]
    f32 = jnp.float32

    # ---- fold down_proj @ out_project into rank-1 wf, then fold wf into up ----
    wf = (wd.astype(f32) @ wo.astype(f32)).reshape(1, I)               # (1, I)
    bf = (bd.astype(f32) @ wo.astype(f32) + bo.astype(f32)).reshape(1, 1)
    wu_fold = wu.astype(f32) * wf                                      # (H, I)
    bu_fold = bu.astype(f32).reshape(1, I) * wf                        # (1, I)

    # ---- fuse gate + folded-up into one weight; pad I to lane-aligned Ip ------
    # 2*Ip is a multiple of 256 -> full MXU columns on v6e/v7x; zero padding is
    # exact because padded up-columns are 0 (their product contributes nothing).
    Ip = _round_up(I, 128)
    w_cat = jnp.zeros((H, 2 * Ip), f32)
    w_cat = w_cat.at[:, :I].set(wg.astype(f32)).at[:, Ip:Ip + I].set(wu_fold)
    b_cat = jnp.zeros((1, 2 * Ip), f32)
    b_cat = b_cat.at[:, :I].set(bg.astype(f32).reshape(1, I))
    b_cat = b_cat.at[:, Ip:Ip + I].set(bu_fold)
    w_cat = w_cat.astype(matmul_dtype)
    # TODO(synk): for very large H*Ip that exceed ~50 MiB (v7x), add an inner
    # "arbitrary" grid axis streaming (H, tI) weight blocks into a (1, tm)
    # f32 accumulator instead of keeping the fused weight fully VMEM-resident.

    # ---- row tiling: multiple of 8, capped at 512; even tile count when the
    # grid has more than one step so the parallel axis spans both v7x TCs. -----
    if tm is None:
        M8 = _round_up(max(M, 1), 8)
        if M8 <= 512:
            tm = M8
        else:
            n = pl.cdiv(M8, 512)
            if n % 2:
                n += 1                      # even number of tiles -> 2 TCs busy
            tm = _round_up(pl.cdiv(M8, n), 8)
    tm = int(min(_round_up(tm, 8), _round_up(M, 8)))
    num_tiles = pl.cdiv(M, tm)

    x2d = x.reshape(M, H)                   # native dtype, no pad/cast HBM pass

    # ---- VMEM budget: generation-aware cap at ~0.8x physical capacity --------
    mm_bytes = np.dtype(matmul_dtype).itemsize
    x_bytes = np.dtype(x.dtype).itemsize
    out_bytes = x_bytes
    est = (2 * H * (2 * Ip) * mm_bytes          # fused weight (buffering headroom)
           + 2 * tm * H * x_bytes               # double-buffered x tiles
           + 2 * tm * out_bytes                 # double-buffered output tiles
           + (4 * tm * Ip + 8 * Ip + 64) * 4)   # f32 gu / inner intermediates + biases
    try:
        vmem_cap = int(pltpu.get_tpu_info().vmem_capacity_bytes)
    except Exception:
        vmem_cap = 64 << 20                     # conservative (v7x-sized) fallback
    vmem_limit = int(min(max(int(1.5 * est), 32 << 20), int(0.8 * vmem_cap)))

    def const_spec(arr, single_buffer):
        nd = arr.ndim
        idx = lambda i: (0,) * nd
        if single_buffer:
            # Block index never changes: one buffer suffices (halves weight VMEM).
            return pl.BlockSpec(arr.shape, idx, pipeline_mode=pl.Buffered(1))
        return pl.BlockSpec(arr.shape, idx)

    def run(single_buffer_consts):
        return pl.pallas_call(
            _segment_predictor_kernel,
            out_shape=jax.ShapeDtypeStruct((num_tiles, 1, tm), x.dtype),
            grid_spec=pltpu.PrefetchScalarGridSpec(
                num_scalar_prefetch=0,
                grid=(num_tiles,),
                in_specs=[
                    pl.BlockSpec((tm, H), lambda i: (i, 0)),   # pipelined x row tile
                    const_spec(w_cat, single_buffer_consts),   # fused gate|up weight
                    const_spec(b_cat, single_buffer_consts),   # fused gate|up bias
                    const_spec(bf, single_buffer_consts),      # folded head bias
                ],
                out_specs=pl.BlockSpec((1, 1, tm), lambda i: (i, 0, 0)),
            ),
            compiler_params=pltpu.CompilerParams(
                dimension_semantics=("parallel",),
                vmem_limit_bytes=vmem_limit,
            ),
        )(x2d, w_cat, b_cat, bf)

    try:
        out3d = run(True)
    except Exception:
        # pl.Buffered(1) on constant inputs not supported by this JAX/Mosaic
        # version -> fall back to default (double-buffered) constants.
        out3d = run(False)

    return out3d.reshape(num_tiles * tm)[:M].reshape(B, S, 1)


def init_params(key, hidden_dim, inner_dim, dtype=jnp.float32):
    """Deterministic synthetic weights. Stored as (in, out) so the kernel does x @ W."""
    ks = jax.random.split(key, 8)
    scale_h = 1.0 / jnp.sqrt(hidden_dim)
    scale_i = 1.0 / jnp.sqrt(inner_dim)
    wg = jax.random.uniform(ks[0], (hidden_dim, inner_dim), dtype, -scale_h, scale_h)
    bg = jax.random.uniform(ks[1], (1, inner_dim), dtype, -scale_h, scale_h)
    wu = jax.random.uniform(ks[2], (hidden_dim, inner_dim), dtype, -scale_h, scale_h)
    bu = jax.random.uniform(ks[3], (1, inner_dim), dtype, -scale_h, scale_h)
    wd = jax.random.uniform(ks[4], (inner_dim, hidden_dim), dtype, -scale_i, scale_i)
    bd = jax.random.uniform(ks[5], (1, hidden_dim), dtype, -scale_i, scale_i)
    wo = jax.random.uniform(ks[6], (hidden_dim, 1), dtype, -scale_h, scale_h)
    bo = jax.random.uniform(ks[7], (1, 1), dtype, -scale_h, scale_h)
    return (wg, bg, wu, bu, wd, bd, wo, bo)


def _reference(x, params):
    wg, bg, wu, bu, wd, bd, wo, bo = params
    gate = x @ wg + bg
    up = x @ wu + bu
    mlp_out = (jax.nn.silu(gate) * up) @ wd + bd
    return jax.nn.sigmoid(mlp_out @ wo + bo)


if __name__ == "__main__":
    key = jax.random.PRNGKey(0)
    k_x, k_p, k_x2 = jax.random.split(key, 3)

    # Small shapes consistent with the module: (batch, seq, hidden).
    batch, seq, hidden_dim, inner_dim = 2, 8, 32, 64
    x = jax.random.normal(k_x, (batch, seq, hidden_dim), jnp.float32)
    params = init_params(k_p, hidden_dim, inner_dim)

    out = jax.block_until_ready(encoder_segment_predictor(x, params))
    ref = _reference(x, params)
    assert out.shape == (batch, seq, 1)
    # bf16 matmul operands (f32 accumulation) -> compare with loosened tolerance.
    assert jnp.allclose(out, ref, atol=2e-2, rtol=2e-2), "mismatch vs reference (small)"

    # Second config: exercises ragged last tile, grid > 1 (pipelining / megacore).
    batch2, seq2 = 4, 300                      # M = 1200 -> 4 tiles of 304 rows
    x2 = jax.random.normal(k_x2, (batch2, seq2, hidden_dim), jnp.float32)
    out2 = jax.block_until_ready(encoder_segment_predictor(x2, params))
    ref2 = _reference(x2, params)
    assert out2.shape == (batch2, seq2, 1)
    assert jnp.allclose(out2, ref2, atol=2e-2, rtol=2e-2), "mismatch vs reference (tiled)"

    print("KERNEL_OK")
</pallas_src>

<mosaic_0001>
module attributes {stable_mosaic.version = 11 : i64} {
  func.func @_segment_predictor_kernel(%arg0: i32, %arg1: memref<16x32xf32, #tpu.memory_space<vmem>>, %arg2: memref<32x256xbf16, #tpu.memory_space<vmem>>, %arg3: memref<1x256xf32, #tpu.memory_space<vmem>>, %arg4: memref<1x1xf32, #tpu.memory_space<vmem>>, %arg5: memref<1x1x16xf32, #tpu.memory_space<vmem>>) attributes {dimension_semantics = [#tpu.dimension_semantics<parallel>], iteration_bounds = array<i64: 1>, scalar_prefetch = 0 : i64, scratch_operands = 0 : i64, tpu.core_type = #tpu.core_type<tc>, window_params = [{transform_indices = @transform_0, window_bounds = array<i64: 16, 32>}, {pipeline_mode = #tpu.pipeline_mode<synchronous>, transform_indices = @transform_1, window_bounds = array<i64: 32, 256>}, {pipeline_mode = #tpu.pipeline_mode<synchronous>, transform_indices = @transform_2, window_bounds = array<i64: 1, 256>}, {pipeline_mode = #tpu.pipeline_mode<synchronous>, transform_indices = @transform_3, window_bounds = array<i64: 1, 1>}, {transform_indices = @transform_4, window_bounds = array<i64: 1, 1, 16>}]} {
    %c0 = arith.constant 0 : index
    %c0_0 = arith.constant 0 : index
    %0 = vector.load %arg1[%c0, %c0_0] : memref<16x32xf32, #tpu.memory_space<vmem>>, vector<16x32xf32>
    %1 = arith.truncf %0 : vector<16x32xf32> to vector<16x32xbf16>
    %c0_1 = arith.constant 0 : index
    %c0_2 = arith.constant 0 : index
    %2 = vector.load %arg2[%c0_1, %c0_2] : memref<32x256xbf16, #tpu.memory_space<vmem>>, vector<32x256xbf16>
    %cst = arith.constant dense<0.000000e+00> : vector<16x256xf32>
    %3 = tpu.matmul %1, %2, %cst {dimension_numbers = #tpu.dot_dimension_numbers<[1], [0], [0], [1], [0, 0, 1, 1], [], []>} : vector<16x32xbf16>, vector<32x256xbf16>, vector<16x256xf32> -> vector<16x256xf32>
    %c0_3 = arith.constant 0 : index
    %c0_4 = arith.constant 0 : index
    %4 = vector.load %arg3[%c0_3, %c0_4] : memref<1x256xf32, #tpu.memory_space<vmem>>, vector<1x256xf32>
    %5 = vector.broadcast %4 : vector<1x256xf32> to vector<16x256xf32>
    %6 = arith.addf %3, %5 : vector<16x256xf32>
    %7 = vector.extract_strided_slice %6 {offsets = [0, 0], sizes = [16, 128], strides = [1, 1]} : vector<16x256xf32> to vector<16x128xf32>
    %8 = vector.extract_strided_slice %6 {offsets = [0, 128], sizes = [16, 128], strides = [1, 1]} : vector<16x256xf32> to vector<16x128xf32>
    %9 = arith.negf %7 : vector<16x128xf32>
    %10 = math.exp %9 : vector<16x128xf32>
    %cst_5 = arith.constant 1.000000e+00 : f32
    %11 = vector.broadcast %cst_5 : f32 to vector<16x128xf32>
    %12 = arith.addf %11, %10 : vector<16x128xf32>
    %13 = arith.divf %11, %12 : vector<16x128xf32>
    %14 = arith.mulf %7, %13 : vector<16x128xf32>
    %15 = arith.mulf %14, %8 : vector<16x128xf32>
    %cst_6 = arith.constant dense<0.000000e+00> : vector<16xf32>
    %16 = vector.multi_reduction <add>, %15, %cst_6 [1] : vector<16x128xf32> to vector<16xf32>
    %17 = vector.shape_cast %16 : vector<16xf32> to vector<1x16xf32>
    %c0_7 = arith.constant 0 : index
    %c0_8 = arith.constant 0 : index
    %18 = vector.load %arg4[%c0_7, %c0_8] : memref<1x1xf32, #tpu.memory_space<vmem>>, vector<1x1xf32>
    %19 = vector.broadcast %18 : vector<1x1xf32> to vector<1x16xf32>
    %20 = arith.addf %17, %19 : vector<1x16xf32>
    %21 = arith.negf %20 : vector<1x16xf32>
    %22 = math.exp %21 : vector<1x16xf32>
    %cst_9 = arith.constant 1.000000e+00 : f32
    %23 = vector.broadcast %cst_9 : f32 to vector<1x16xf32>
    %24 = arith.addf %23, %22 : vector<1x16xf32>
    %25 = arith.divf %23, %24 : vector<1x16xf32>
    %26 = vector.shape_cast %25 : vector<1x16xf32> to vector<1x1x16xf32>
    %c0_10 = arith.constant 0 : index
    %c0_11 = arith.constant 0 : index
    %c0_12 = arith.constant 0 : index
    %27 = vector.load %arg5[%c0_10, %c0_11, %c0_12] : memref<1x1x16xf32, #tpu.memory_space<vmem>>, vector<1x1x16xf32>
    tpu.vector_store %arg5[%c0_10, %c0_11, %c0_12], %26 {strides = array<i32>} : memref<1x1x16xf32, #tpu.memory_space<vmem>>, vector<1x1x16xf32>,
    return
  }
  func.func @transform_0(%arg0: i32) -> (i32, i32) {
    %c0_i32 = arith.constant 0 : i32
    %c0_i32_0 = arith.constant 0 : i32
    return %arg0, %c0_i32 : i32, i32
  }
  func.func @transform_1(%arg0: i32) -> (i32, i32) {
    %c0_i32 = arith.constant 0 : i32
    %c0_i32_0 = arith.constant 0 : i32
    %c0_i32_1 = arith.constant 0 : i32
    return %c0_i32, %c0_i32_0 : i32, i32
  }
  func.func @transform_2(%arg0: i32) -> (i32, i32) {
    %c0_i32 = arith.constant 0 : i32
    %c0_i32_0 = arith.constant 0 : i32
    %c0_i32_1 = arith.constant 0 : i32
    return %c0_i32, %c0_i32_0 : i32, i32
  }
  func.func @transform_3(%arg0: i32) -> (i32, i32) {
    %c0_i32 = arith.constant 0 : i32
    %c0_i32_0 = arith.constant 0 : i32
    %c0_i32_1 = arith.constant 0 : i32
    return %c0_i32, %c0_i32_0 : i32, i32
  }
  func.func @transform_4(%arg0: i32) -> (i32, i32, i32) {
    %c0_i32 = arith.constant 0 : i32
    %c0_i32_0 = arith.constant 0 : i32
    %c0_i32_1 = arith.constant 0 : i32
    return %arg0, %c0_i32, %c0_i32_0 : i32, i32, i32
  }
}

module attributes {stable_mosaic.version = 11 : i64} {
  func.func @_segment_predictor_kernel(%arg0: i32, %arg1: memref<16x32xf32, #tpu.memory_space<vmem>>, %arg2: memref<32x256xbf16, #tpu.memory_space<vmem>>, %arg3: memref<1x256xf32, #tpu.memory_space<vmem>>, %arg4: memref<1x1xf32, #tpu.memory_space<vmem>>, %arg5: memref<1x1x16xf32, #tpu.memory_space<vmem>>) attributes {dimension_semantics = [#tpu.dimension_semantics<parallel>], iteration_bounds = array<i64: 1>, scalar_prefetch = 0 : i64, scratch_operands = 0 : i64, tpu.core_type = #tpu.core_type<tc>, window_params = [{transform_indices = @transform_0, window_bounds = array<i64: 16, 32>}, {pipeline_mode = #tpu.pipeline_mode<synchronous>, transform_indices = @transform_1, window_bounds = array<i64: 32, 256>}, {pipeline_mode = #tpu.pipeline_mode<synchronous>, transform_indices = @transform_2, window_bounds = array<i64: 1, 256>}, {pipeline_mode = #tpu.pipeline_mode<synchronous>, transform_indices = @transform_3, window_bounds = array<i64: 1, 1>}, {transform_indices = @transform_4, window_bounds = array<i64: 1, 1, 16>}]} {
    %c0 = arith.constant 0 : index
    %c0_0 = arith.constant 0 : index
    %0 = vector.load %arg1[%c0, %c0_0] : memref<16x32xf32, #tpu.memory_space<vmem>>, vector<16x32xf32>
    %1 = arith.truncf %0 : vector<16x32xf32> to vector<16x32xbf16>
    %c0_1 = arith.constant 0 : index
    %c0_2 = arith.constant 0 : index
    %2 = vector.load %arg2[%c0_1, %c0_2] : memref<32x256xbf16, #tpu.memory_space<vmem>>, vector<32x256xbf16>
    %cst = arith.constant dense<0.000000e+00> : vector<16x256xf32>
    %3 = tpu.matmul %1, %2, %cst {dimension_numbers = #tpu.dot_dimension_numbers<[1], [0], [0], [1], [0, 0, 1, 1], [], []>} : vector<16x32xbf16>, vector<32x256xbf16>, vector<16x256xf32> -> vector<16x256xf32>
    %c0_3 = arith.constant 0 : index
    %c0_4 = arith.constant 0 : index
    %4 = vector.load %arg3[%c0_3, %c0_4] : memref<1x256xf32, #tpu.memory_space<vmem>>, vector<1x256xf32>
    %5 = vector.broadcast %4 : vector<1x256xf32> to vector<16x256xf32>
    %6 = arith.addf %3, %5 : vector<16x256xf32>
    %7 = vector.extract_strided_slice %6 {offsets = [0, 0], sizes = [16, 128], strides = [1, 1]} : vector<16x256xf32> to vector<16x128xf32>
    %8 = vector.extract_strided_slice %6 {offsets = [0, 128], sizes = [16, 128], strides = [1, 1]} : vector<16x256xf32> to vector<16x128xf32>
    %9 = arith.negf %7 : vector<16x128xf32>
    %10 = math.exp %9 : vector<16x128xf32>
    %cst_5 = arith.constant 1.000000e+00 : f32
    %11 = vector.broadcast %cst_5 : f32 to vector<16x128xf32>
    %12 = arith.addf %11, %10 : vector<16x128xf32>
    %13 = arith.divf %11, %12 : vector<16x128xf32>
    %14 = arith.mulf %7, %13 : vector<16x128xf32>
    %15 = arith.mulf %14, %8 : vector<16x128xf32>
    %cst_6 = arith.constant dense<0.000000e+00> : vector<16xf32>
    %16 = vector.multi_reduction <add>, %15, %cst_6 [1] : vector<16x128xf32> to vector<16xf32>
    %17 = vector.shape_cast %16 : vector<16xf32> to vector<1x16xf32>
    %c0_7 = arith.constant 0 : index
    %c0_8 = arith.constant 0 : index
    %18 = vector.load %arg4[%c0_7, %c0_8] : memref<1x1xf32, #tpu.memory_space<vmem>>, vector<1x1xf32>
    %19 = vector.broadcast %18 : vector<1x1xf32> to vector<1x16xf32>
    %20 = arith.addf %17, %19 : vector<1x16xf32>
    %21 = arith.negf %20 : vector<1x16xf32>
    %22 = math.exp %21 : vector<1x16xf32>
    %cst_9 = arith.constant 1.000000e+00 : f32
    %23 = vector.broadcast %cst_9 : f32 to vector<1x16xf32>
    %24 = arith.addf %23, %22 : vector<1x16xf32>
    %25 = arith.divf %23, %24 : vector<1x16xf32>
    %26 = vector.shape_cast %25 : vector<1x16xf32> to vector<1x1x16xf32>
    %c0_10 = arith.constant 0 : index
    %c0_11 = arith.constant 0 : index
    %c0_12 = arith.constant 0 : index
    %27 = vector.load %arg5[%c0_10, %c0_11, %c0_12] : memref<1x1x16xf32, #tpu.memory_space<vmem>>, vector<1x1x16xf32>
    tpu.vector_store %arg5[%c0_10, %c0_11, %c0_12], %26 {strides = array<i32>} : memref<1x1x16xf32, #tpu.memory_space<vmem>>, vector<1x1x16xf32>,
    return
  }
  func.func @transform_0(%arg0: i32) -> (i32, i32) {
    %c0_i32 = arith.constant 0 : i32
    %c0_i32_0 = arith.constant 0 : i32
    return %arg0, %c0_i32 : i32, i32
  }
  func.func @transform_1(%arg0: i32) -> (i32, i32) {
    %c0_i32 = arith.constant 0 : i32
    %c0_i32_0 = arith.constant 0 : i32
    %c0_i32_1 = arith.constant 0 : i32
    return %c0_i32, %c0_i32_0 : i32, i32
  }
  func.func @transform_2(%arg0: i32) -> (i32, i32) {
    %c0_i32 = arith.constant 0 : i32
    %c0_i32_0 = arith.constant 0 : i32
    %c0_i32_1 = arith.constant 0 : i32
    return %c0_i32, %c0_i32_0 : i32, i32
  }
  func.func @transform_3(%arg0: i32) -> (i32, i32) {
    %c0_i32 = arith.constant 0 : i32
    %c0_i32_0 = arith.constant 0 : i32
    %c0_i32_1 = arith.constant 0 : i32
    return %c0_i32, %c0_i32_0 : i32, i32
  }
  func.func @transform_4(%arg0: i32) -> (i32, i32, i32) {
    %c0_i32 = arith.constant 0 : i32
    %c0_i32_0 = arith.constant 0 : i32
    %c0_i32_1 = arith.constant 0 : i32
    return %arg0, %c0_i32, %c0_i32_0 : i32, i32, i32
  }
}

</mosaic_0001>

<llo_original>
// kernel: tpu_custom_call.1
$region0: #{tpu_custom_call.1}
  #allocation0 [shape = 'u32[]', space=smem, size = 0x4, offset = 0x4, fixed_abs, tag = 'smem constant byte address 0x4 - core index']
  #allocation1 [shape = 'u32[144,128]{1,0:T(1,128)}', space=vmem, size = 0x12000, scoped, tag = 'internal scratch']
  #allocation2 [shape = 'f32[1,1]{1,0:T(1,128)S(1)}', space=vmem, size = 0x200, scoped, tag = 'scoped memory for tpu_custom_call.1']
  %s0 = inlined_call_operand.hbm [shape: f32[16,32], index: 0, kind: input, shape index: {}]
  %s1 = inlined_call_operand.hbm [shape: bf16[32,256], index: 1, kind: input, shape index: {}]
  %s2 = inlined_call_operand.vmem [shape: f32[1,256], index: 2, kind: input, shape index: {}]
  %s3 = inlined_call_operand.<no memory space> [shape: f32[1,1], index: 3, kind: input, shape index: {}]
  %s4 = inlined_call_operand.hbm [shape: f32[1,1,16], index: 4, kind: output, shape index: {}]
  %s5 = sld [smem:[#allocation0]]
  $region34: #{tpu_custom_call.1} parent=0
    _
  %s7 = ssub.s32 1, %s5
  %s8 = scalar_select 0, %s7, %s5
  %v9 = vstv %s3
  %10 = vst [vmem:[#allocation2] sm:$0x1] %v9
  $region1: #{tpu_custom_call.1} parent=0
    #allocation3 [shape = 'u8[8192]{0}', space=vmem, size = 0x2000, scoped, tag = 'input window, operand 0, single buffered']
    #allocation4 [shape = 's32[1]{0}', space=sflag, size = 0x4, scoped, tag = 'scoped memory for tpu_custom_call.1']
    #allocation5 [shape = 's32[1]{0}', space=sflag, size = 0x4, scoped, tag = 'scoped memory for tpu_custom_call.1']
    #allocation6 [shape = 'u8[16384]{0}', space=vmem, size = 0x4000, scoped, tag = 'input window, operand 1, single buffered']
    #allocation7 [shape = 's32[1]{0}', space=sflag, size = 0x4, scoped, tag = 'scoped memory for tpu_custom_call.1']
    #allocation8 [shape = 'u8[512]{0}', space=vmem, size = 0x400, scoped, tag = 'output window, operand 0, single buffered']
    %11 = vsyncpa [#allocation4], 0
    %12 = vsyncpa [#allocation7], 0
    %13 = vsyncpa [#allocation5], 0
    // Predicated region
    $region2: #{tpu_custom_call.1} parent=1 // pred_check
      _
    $region3: #{tpu_custom_call.1} parent=1 // pred_check_branch
      %15 = sbr.rel (0) target = $region5
    $region4: #{tpu_custom_call.1} parent=1 // pred_region
      %s17 = ssub.s32 256, 256
      %18 = vsyncadd [#allocation4], %s17
      %s19 = sshll.u32 [#allocation3], 4
      %s20 = int_to_ptr.vmem [resolvable:$true] %s19
      %25 = dma.hbm_to_vmem [thread:$0]  %s0, 256, %s20, [#allocation4], 128, 128, 8
    $region5: #{tpu_custom_call.1} parent=1 // pred_fallthru
      _
    // Predicated region
    $region6: #{tpu_custom_call.1} parent=1 // pred_check
      _
    $region7: #{tpu_custom_call.1} parent=1 // pred_check_branch
      %27 = sbr.rel (0) target = $region9
    $region8: #{tpu_custom_call.1} parent=1 // pred_region
      %s29 = ssub.s32 512, 512
      %30 = vsyncadd [#allocation7], %s29
      %s31 = sshll.u32 [#allocation6], 4
      %s32 = int_to_ptr.vmem [resolvable:$true] %s31
      %37 = dma.hbm_to_vmem [thread:$0]  %s1, 512, %s32, [#allocation7], 128, 128, 8
    $region9: #{tpu_custom_call.1} parent=1 // pred_fallthru
      _
    // Predicated region
    $region10: #{tpu_custom_call.1} parent=1 // pred_check
      _
    $region11: #{tpu_custom_call.1} parent=1 // pred_check_branch
      %39 = sbr.rel (0) target = $region13
    $region12: #{tpu_custom_call.1} parent=1 // pred_region
      _
    $region13: #{tpu_custom_call.1} parent=1 // pred_fallthru
      _
    // Predicated region
    $region14: #{tpu_custom_call.1} parent=1 // pred_check
      _
    $region15: #{tpu_custom_call.1} parent=1 // pred_check_branch
      %41 = sbr.rel (0) target = $region17
    $region16: #{tpu_custom_call.1} parent=1 // pred_region
      _
    $region17: #{tpu_custom_call.1} parent=1 // pred_fallthru
      _
    // Predicated region
    $region18: #{tpu_custom_call.1} parent=1 // pred_check
      _
    $region19: #{tpu_custom_call.1} parent=1 // pred_check_branch
      %43 = sbr.rel (0) target = $region21
    $region20: #{tpu_custom_call.1} parent=1 // pred_region
      %44 = dma.done [#allocation4], 256
    $region21: #{tpu_custom_call.1} parent=1 // pred_fallthru
      _
    // Predicated region
    $region22: #{tpu_custom_call.1} parent=1 // pred_check
      _
    $region23: #{tpu_custom_call.1} parent=1 // pred_check_branch
      %46 = sbr.rel (0) target = $region25
    $region24: #{tpu_custom_call.1} parent=1 // pred_region
      %47 = dma.done [#allocation7], 512
    $region25: #{tpu_custom_call.1} parent=1 // pred_fallthru
      _
    %v49 = vld [vmem:[#allocation3] sm:$0xff]
    %v50 = vld [vmem:[#allocation3 + $0x8] sm:$0xff]
    %v51 = vpack.c.bf16 %v50, %v49
    %v52 = vld [vmem:[#allocation6] sm:$0xff]
    %v53 = vld [vmem:[#allocation6 + $0x8] sm:$0xff]
    %v54 = vld [vmem:[#allocation6 + $0x10] sm:$0xff]
    %v55 = vld [vmem:[#allocation6 + $0x18] sm:$0xff]
    %v56 = vld [vmem:[%s2] sm:$0x3]
    %v58 = vlaneseq
    %v59 = vshrl.u32 %v58, 7
    %v60 = vsub.s32 0, %v59
    %v61 = vrot.slane %v56, %v60
    %v62 = vlaneseq
    %v63 = vshrl.u32 %v62, 7
    %v64 = vsub.s32 1, %v63
    %v65 = vrot.slane %v56, %v64
    %v72 = vunpack.c.l.b16 %v52
    %v73 = vunpack.c.h.b16 %v52
    %v74 = vunpack.c.l.b16 %v53
    %v75 = vunpack.c.h.b16 %v53
    %v76 = vunpack.c.l.b16 %v54
    %v77 = vunpack.c.h.b16 %v54
    %v78 = vunpack.c.l.b16 %v55
    %v79 = vunpack.c.h.b16 %v55
    %v80 = vpack.c.b16 %v74, %v72
    %v81 = vpack.c.b16 %v75, %v73
    %v82 = vpack.c.b16 %v78, %v76
    %v83 = vpack.c.b16 %v79, %v77
    %vm88 = vcmask 261120
    %v90 = vsel %vm88, %v51, 0
    %92 = vmatprep.subr.bf16.mxu0 0
    %93 = vmatpush1.bf16.msra.mxu0 0
    %94 = vmatprep.subr.bf16.mxu0 0
    %95 = vmatpush1.bf16.msra.mxu0 0
    %96 = vmatprep.subr.bf16.mxu0 0
    %97 = vmatpush1.bf16.msra.mxu0 0
    %98 = vmatprep.subr.bf16.mxu0 0
    %99 = vmatpush1.bf16.msra.mxu0 0
    %100 = vmatprep.subr.bf16.mxu0 0
    %101 = vmatpush1.bf16.msra.mxu0 0
    %102 = vmatprep.subr.bf16.mxu0 0
    %103 = vmatpush1.bf16.msra.mxu0 0
    %104 = vmatprep.subr.bf16.mxu0 %v83
    %105 = vmatpush1.bf16.msra.mxu0 %v82
    %106 = vmatprep.subr.bf16.mxu0 %v81
    %107 = vmatpush1.bf16.msra.mxu0 %v80
    %108 = vmatprep.subr.bf16.mxu0 0
    %109 = vmatpush2.bf16.msra.mxu0 0
    %110 = vmatprep.subr.bf16.mxu0 0
    %111 = vmatpush2.bf16.msra.mxu0 0
    %112 = vmatprep.subr.bf16.mxu0 0
    %113 = vmatpush2.bf16.msra.mxu0 0
    %114 = vmatprep.subr.bf16.mxu0 0
    %115 = vmatpush2.bf16.msra.mxu0 0
    %116 = vmatprep.subr.bf16.mxu0 0
    %117 = vmatpush2.bf16.msra.mxu0 0
    %118 = vmatprep.subr.bf16.mxu0 0
    %119 = vmatpush2.bf16.msra.mxu0 0
    %120 = vmatprep.subr.bf16.mxu0 0
    %121 = vmatpush2.bf16.msra.mxu0 0
    %122 = vmatprep.subr.bf16.mxu0 0
    %123 = vmatpush2.bf16.msra.mxu0 0
    %124 = vmatprep.mubr.bf16.mxu0 0
    %125 = vmatmul.mubr.bf16.gmra.mxu0 %v90
    %v126 = vpop.f32.mrf.mxu0
    %v127 = vadd.f32 %v61, %v126
    %v128 = vpop.f32.mrf.mxu0
    %v129 = vadd.f32 %v65, %v128
    %v130 = vpop.f32.mrf.mxu0
    %v131 = vadd.f32 %v61, %v130
    %v132 = vpop.f32.mrf.mxu0
    %v133 = vadd.f32 %v65, %v132
    %134 = vdwg.mxu0
    %v135 = vxor.u32 %v127, 2147483648
    %v136 = vxor.u32 %v131, 2147483648
    %v137 = vmul.f32 %v135, 1.442695
    %v138 = vpow.pop %v137
    %v139 = vmul.f32 %v136, 1.442695
    %v140 = vpow.pop %v139
    %v141 = vadd.f32 %v138, 1.0
    %v142 = vadd.f32 %v140, 1.0
    %v143 = vrcp.pop %v141
    %v144 = vmul.f32 1.0, %v143
    %v145 = vrcp.pop %v142
    %v146 = vmul.f32 1.0, %v145
    %v147 = vmul.f32 %v127, %v144
    %v148 = vmul.f32 %v131, %v146
    %v149 = vmul.f32 %v147, %v129
    %v150 = vmul.f32 %v148, %v133
    %151 = vadd.xlane.f32.xlu0 %v149
    %v152 = vpop.xlane.xlu0 %151
    %153 = vadd.xlane.f32.xlu0 %v150
    %v154 = vpop.xlane.xlu0 %153
    %v155 = vld [vmem:[#allocation2] sm:$0x1]
    %157 = vset.pattern.permute.xlu0 0
    %158 = vperm.xlu0 %157, %v155
    %v159 = vpop.permute.xlu0 %158
    %v161 = vlaneseq
    %v162 = vshrl.u32 %v161, 7
    %v163 = vsub.s32 0, %v162
    %v164 = vrot.slane %v159, %v163
    %v165 = vadd.f32 %v152, %v164
    %v166 = vadd.f32 %v154, %v164
    %v167 = vxor.u32 %v165, 2147483648
    %v168 = vxor.u32 %v166, 2147483648
    %v169 = vmul.f32 %v167, 1.442695
    %v170 = vpow.pop %v169
    %v171 = vmul.f32 %v168, 1.442695
    %v172 = vpow.pop %v171
    %v173 = vadd.f32 %v170, 1.0
    %v174 = vadd.f32 %v172, 1.0
    %v175 = vrcp.pop %v173
    %v176 = vmul.f32 1.0, %v175
    %v177 = vrcp.pop %v174
    %v178 = vmul.f32 1.0, %v177
    %v181 = vlaneseq
    %v182 = vand.u32 %v181, 127
    %v183 = vlaneseq
    %v184 = vshrl.u32 %v183, 7
    %v185 = vsub.s32 %v182, %v184
    %v186 = vrot.slane %v176, %v185
    %v187 = vadd.s32 %v182, 4294967288
    %v188 = vlaneseq
    %v189 = vshrl.u32 %v188, 7
    %v190 = vsub.s32 %v187, %v189
    %v191 = vrot.slane %v178, %v190
    %vm192 = vcmask 130112
    %v193 = vsel %vm192, %v191, %v186
    %vm195 = vcmask 122880
    %196 = vst.msk [vmem:[#allocation8] sm:$0x1] %vm195, %v193
    // Predicated region
    $region26: #{tpu_custom_call.1} parent=1 // pred_check
      _
    $region27: #{tpu_custom_call.1} parent=1 // pred_check_branch
      %198 = sbr.rel (0) target = $region29
    $region28: #{tpu_custom_call.1} parent=1 // pred_region
      %s200 = ssub.s32 16, 16
      %201 = vsyncadd [#allocation5], %s200
      %s203 = sshll.u32 [#allocation8], 4
      %s204 = int_to_ptr.vmem [resolvable:$true] %s203
      %206 = dma.vmem_to_hbm [thread:$0]  %s204, 16, %s4, [#allocation5]
    $region29: #{tpu_custom_call.1} parent=1 // pred_fallthru
      _
    // Predicated region
    $region30: #{tpu_custom_call.1} parent=1 // pred_check
      _
    $region31: #{tpu_custom_call.1} parent=1 // pred_check_branch
      %208 = sbr.rel (0) target = $region33
    $region32: #{tpu_custom_call.1} parent=1 // pred_region
      %209 = dma.done [#allocation5], 16
    $region33: #{tpu_custom_call.1} parent=1 // pred_fallthru
      _
    %210 = vsyncpa [#allocation4], 1
    %211 = vsyncpa [#allocation7], 1
    %212 = vsyncpa [#allocation5], 1

// kernel: tpu_custom_call.1
$region0: #{tpu_custom_call.1}
  #allocation0 [shape = 'u32[]', space=smem, size = 0x4, offset = 0x4, fixed_abs, tag = 'smem constant byte address 0x4 - core index']
  #allocation1 [shape = 'u32[144,128]{1,0:T(1,128)}', space=vmem, size = 0x12000, scoped, tag = 'internal scratch']
  #allocation2 [shape = 'f32[1,1]{1,0:T(1,128)S(1)}', space=vmem, size = 0x200, scoped, tag = 'scoped memory for tpu_custom_call.1']
  %s0 = inlined_call_operand.hbm [shape: f32[16,32], index: 0, kind: input, shape index: {}]
  %s1 = inlined_call_operand.hbm [shape: bf16[32,256], index: 1, kind: input, shape index: {}]
  %s2 = inlined_call_operand.vmem [shape: f32[1,256], index: 2, kind: input, shape index: {}]
  %s3 = inlined_call_operand.<no memory space> [shape: f32[1,1], index: 3, kind: input, shape index: {}]
  %s4 = inlined_call_operand.hbm [shape: f32[1,1,16], index: 4, kind: output, shape index: {}]
  %s5 = sld [smem:[#allocation0]]
  $region34: #{tpu_custom_call.1} parent=0
    _
  %s7 = ssub.s32 1, %s5
  %s8 = scalar_select 0, %s7, %s5
  %v9 = vstv %s3
  %10 = vst [vmem:[#allocation2] sm:$0x1] %v9
  $region1: #{tpu_custom_call.1} parent=0
    #allocation3 [shape = 'u8[8192]{0}', space=vmem, size = 0x2000, scoped, tag = 'input window, operand 0, single buffered']
    #allocation4 [shape = 's32[1]{0}', space=sflag, size = 0x4, scoped, tag = 'scoped memory for tpu_custom_call.1']
    #allocation5 [shape = 's32[1]{0}', space=sflag, size = 0x4, scoped, tag = 'scoped memory for tpu_custom_call.1']
    #allocation6 [shape = 'u8[16384]{0}', space=vmem, size = 0x4000, scoped, tag = 'input window, operand 1, single buffered']
    #allocation7 [shape = 's32[1]{0}', space=sflag, size = 0x4, scoped, tag = 'scoped memory for tpu_custom_call.1']
    #allocation8 [shape = 'u8[512]{0}', space=vmem, size = 0x400, scoped, tag = 'output window, operand 0, single buffered']
    %11 = vsyncpa [#allocation4], 0
    %12 = vsyncpa [#allocation7], 0
    %13 = vsyncpa [#allocation5], 0
    // Predicated region
    $region2: #{tpu_custom_call.1} parent=1 // pred_check
      _
    $region3: #{tpu_custom_call.1} parent=1 // pred_check_branch
      %15 = sbr.rel (0) target = $region5
    $region4: #{tpu_custom_call.1} parent=1 // pred_region
      %s17 = ssub.s32 256, 256
      %18 = vsyncadd [#allocation4], %s17
      %s19 = sshll.u32 [#allocation3], 4
      %s20 = int_to_ptr.vmem [resolvable:$true] %s19
      %25 = dma.hbm_to_vmem [thread:$0]  %s0, 256, %s20, [#allocation4], 128, 128, 8
    $region5: #{tpu_custom_call.1} parent=1 // pred_fallthru
      _
    // Predicated region
    $region6: #{tpu_custom_call.1} parent=1 // pred_check
      _
    $region7: #{tpu_custom_call.1} parent=1 // pred_check_branch
      %27 = sbr.rel (0) target = $region9
    $region8: #{tpu_custom_call.1} parent=1 // pred_region
      %s29 = ssub.s32 512, 512
      %30 = vsyncadd [#allocation7], %s29
      %s31 = sshll.u32 [#allocation6], 4
      %s32 = int_to_ptr.vmem [resolvable:$true] %s31
      %37 = dma.hbm_to_vmem [thread:$0]  %s1, 512, %s32, [#allocation7], 128, 128, 8
    $region9: #{tpu_custom_call.1} parent=1 // pred_fallthru
      _
    // Predicated region
    $region10: #{tpu_custom_call.1} parent=1 // pred_check
      _
    $region11: #{tpu_custom_call.1} parent=1 // pred_check_branch
      %39 = sbr.rel (0) target = $region13
    $region12: #{tpu_custom_call.1} parent=1 // pred_region
      _
    $region13: #{tpu_custom_call.1} parent=1 // pred_fallthru
      _
    // Predicated region
    $region14: #{tpu_custom_call.1} parent=1 // pred_check
      _
    $region15: #{tpu_custom_call.1} parent=1 // pred_check_branch
      %41 = sbr.rel (0) target = $region17
    $region16: #{tpu_custom_call.1} parent=1 // pred_region
      _
    $region17: #{tpu_custom_call.1} parent=1 // pred_fallthru
      _
    // Predicated region
    $region18: #{tpu_custom_call.1} parent=1 // pred_check
      _
    $region19: #{tpu_custom_call.1} parent=1 // pred_check_branch
      %43 = sbr.rel (0) target = $region21
    $region20: #{tpu_custom_call.1} parent=1 // pred_region
      %44 = dma.done [#allocation4], 256
    $region21: #{tpu_custom_call.1} parent=1 // pred_fallthru
      _
    // Predicated region
    $region22: #{tpu_custom_call.1} parent=1 // pred_check
      _
    $region23: #{tpu_custom_call.1} parent=1 // pred_check_branch
      %46 = sbr.rel (0) target = $region25
    $region24: #{tpu_custom_call.1} parent=1 // pred_region
      %47 = dma.done [#allocation7], 512
    $region25: #{tpu_custom_call.1} parent=1 // pred_fallthru
      _
    %v49 = vld [vmem:[#allocation3] sm:$0xff]
    %v50 = vld [vmem:[#allocation3 + $0x8] sm:$0xff]
    %v51 = vpack.c.bf16 %v50, %v49
    %v52 = vld [vmem:[#allocation6] sm:$0xff]
    %v53 = vld [vmem:[#allocation6 + $0x8] sm:$0xff]
    %v54 = vld [vmem:[#allocation6 + $0x10] sm:$0xff]
    %v55 = vld [vmem:[#allocation6 + $0x18] sm:$0xff]
    %v56 = vld [vmem:[%s2] sm:$0x3]
    %v58 = vlaneseq
    %v59 = vshrl.u32 %v58, 7
    %v60 = vsub.s32 0, %v59
    %v61 = vrot.slane %v56, %v60
    %v62 = vlaneseq
    %v63 = vshrl.u32 %v62, 7
    %v64 = vsub.s32 1, %v63
    %v65 = vrot.slane %v56, %v64
    %v72 = vunpack.c.l.b16 %v52
    %v73 = vunpack.c.h.b16 %v52
    %v74 = vunpack.c.l.b16 %v53
    %v75 = vunpack.c.h.b16 %v53
    %v76 = vunpack.c.l.b16 %v54
    %v77 = vunpack.c.h.b16 %v54
    %v78 = vunpack.c.l.b16 %v55
    %v79 = vunpack.c.h.b16 %v55
    %v80 = vpack.c.b16 %v74, %v72
    %v81 = vpack.c.b16 %v75, %v73
    %v82 = vpack.c.b16 %v78, %v76
    %v83 = vpack.c.b16 %v79, %v77
    %vm88 = vcmask 261120
    %v90 = vsel %vm88, %v51, 0
    %92 = vmatprep.subr.bf16.mxu0 0
    %93 = vmatpush1.bf16.msra.mxu0 0
    %94 = vmatprep.subr.bf16.mxu0 0
    %95 = vmatpush1.bf16.msra.mxu0 0
    %96 = vmatprep.subr.bf16.mxu0 0
    %97 = vmatpush1.bf16.msra.mxu0 0
    %98 = vmatprep.subr.bf16.mxu0 0
    %99 = vmatpush1.bf16.msra.mxu0 0
    %100 = vmatprep.subr.bf16.mxu0 0
    %101 = vmatpush1.bf16.msra.mxu0 0
    %102 = vmatprep.subr.bf16.mxu0 0
    %103 = vmatpush1.bf16.msra.mxu0 0
    %104 = vmatprep.subr.bf16.mxu0 %v83
    %105 = vmatpush1.bf16.msra.mxu0 %v82
    %106 = vmatprep.subr.bf16.mxu0 %v81
    %107 = vmatpush1.bf16.msra.mxu0 %v80
    %108 = vmatprep.subr.bf16.mxu0 0
    %109 = vmatpush2.bf16.msra.mxu0 0
    %110 = vmatprep.subr.bf16.mxu0 0
    %111 = vmatpush2.bf16.msra.mxu0 0
    %112 = vmatprep.subr.bf16.mxu0 0
    %113 = vmatpush2.bf16.msra.mxu0 0
    %114 = vmatprep.subr.bf16.mxu0 0
    %115 = vmatpush2.bf16.msra.mxu0 0
    %116 = vmatprep.subr.bf16.mxu0 0
    %117 = vmatpush2.bf16.msra.mxu0 0
    %118 = vmatprep.subr.bf16.mxu0 0
    %119 = vmatpush2.bf16.msra.mxu0 0
    %120 = vmatprep.subr.bf16.mxu0 0
    %121 = vmatpush2.bf16.msra.mxu0 0
    %122 = vmatprep.subr.bf16.mxu0 0
    %123 = vmatpush2.bf16.msra.mxu0 0
    %124 = vmatprep.mubr.bf16.mxu0 0
    %125 = vmatmul.mubr.bf16.gmra.mxu0 %v90
    %v126 = vpop.f32.mrf.mxu0
    %v127 = vadd.f32 %v61, %v126
    %v128 = vpop.f32.mrf.mxu0
    %v129 = vadd.f32 %v65, %v128
    %v130 = vpop.f32.mrf.mxu0
    %v131 = vadd.f32 %v61, %v130
    %v132 = vpop.f32.mrf.mxu0
    %v133 = vadd.f32 %v65, %v132
    %134 = vdwg.mxu0
    %v135 = vxor.u32 %v127, 2147483648
    %v136 = vxor.u32 %v131, 2147483648
    %v137 = vmul.f32 %v135, 1.442695
    %v138 = vpow.pop %v137
    %v139 = vmul.f32 %v136, 1.442695
    %v140 = vpow.pop %v139
    %v141 = vadd.f32 %v138, 1.0
    %v142 = vadd.f32 %v140, 1.0
    %v143 = vrcp.pop %v141
    %v144 = vmul.f32 1.0, %v143
    %v145 = vrcp.pop %v142
    %v146 = vmul.f32 1.0, %v145
    %v147 = vmul.f32 %v127, %v144
    %v148 = vmul.f32 %v131, %v146
    %v149 = vmul.f32 %v147, %v129
    %v150 = vmul.f32 %v148, %v133
    %151 = vadd.xlane.f32.xlu0 %v149
    %v152 = vpop.xlane.xlu0 %151
    %153 = vadd.xlane.f32.xlu0 %v150
    %v154 = vpop.xlane.xlu0 %153
    %v155 = vld [vmem:[#allocation2] sm:$0x1]
    %157 = vset.pattern.permute.xlu0 0
    %158 = vperm.xlu0 %157, %v155
    %v159 = vpop.permute.xlu0 %158
    %v161 = vlaneseq
    %v162 = vshrl.u32 %v161, 7
    %v163 = vsub.s32 0, %v162
    %v164 = vrot.slane %v159, %v163
    %v165 = vadd.f32 %v152, %v164
    %v166 = vadd.f32 %v154, %v164
    %v167 = vxor.u32 %v165, 2147483648
    %v168 = vxor.u32 %v166, 2147483648
    %v169 = vmul.f32 %v167, 1.442695
    %v170 = vpow.pop %v169
    %v171 = vmul.f32 %v168, 1.442695
    %v172 = vpow.pop %v171
    %v173 = vadd.f32 %v170, 1.0
    %v174 = vadd.f32 %v172, 1.0
    %v175 = vrcp.pop %v173
    %v176 = vmul.f32 1.0, %v175
    %v177 = vrcp.pop %v174
    %v178 = vmul.f32 1.0, %v177
    %v181 = vlaneseq
    %v182 = vand.u32 %v181, 127
    %v183 = vlaneseq
    %v184 = vshrl.u32 %v183, 7
    %v185 = vsub.s32 %v182, %v184
    %v186 = vrot.slane %v176, %v185
    %v187 = vadd.s32 %v182, 4294967288
    %v188 = vlaneseq
    %v189 = vshrl.u32 %v188, 7
    %v190 = vsub.s32 %v187, %v189
    %v191 = vrot.slane %v178, %v190
    %vm192 = vcmask 130112
    %v193 = vsel %vm192, %v191, %v186
    %vm195 = vcmask 122880
    %196 = vst.msk [vmem:[#allocation8] sm:$0x1] %vm195, %v193
    // Predicated region
    $region26: #{tpu_custom_call.1} parent=1 // pred_check
      _
    $region27: #{tpu_custom_call.1} parent=1 // pred_check_branch
      %198 = sbr.rel (0) target = $region29
    $region28: #{tpu_custom_call.1} parent=1 // pred_region
      %s200 = ssub.s32 16, 16
      %201 = vsyncadd [#allocation5], %s200
      %s203 = sshll.u32 [#allocation8], 4
      %s204 = int_to_ptr.vmem [resolvable:$true] %s203
      %206 = dma.vmem_to_hbm [thread:$0]  %s204, 16, %s4, [#allocation5]
    $region29: #{tpu_custom_call.1} parent=1 // pred_fallthru
      _
    // Predicated region
    $region30: #{tpu_custom_call.1} parent=1 // pred_check
      _
    $region31: #{tpu_custom_call.1} parent=1 // pred_check_branch
      %208 = sbr.rel (0) target = $region33
    $region32: #{tpu_custom_call.1} parent=1 // pred_region
      %209 = dma.done [#allocation5], 16
    $region33: #{tpu_custom_call.1} parent=1 // pred_fallthru
      _
    %210 = vsyncpa [#allocation4], 1
    %211 = vsyncpa [#allocation7], 1
    %212 = vsyncpa [#allocation5], 1

</llo_original>
